<compile_context>
chip_gen: v7x
topology: tpu7x:2x2x1
jax: 0.10.0
libtpu: 0.0.40
codegen_flags: <defaults>
</compile_context>

<pallas_src>
import functools

import jax
import jax.numpy as jnp
from jax import lax
from jax.experimental import pallas as pl
from jax.experimental.pallas import tpu as pltpu


def _sgns_kernel(center_ref, pn_ref, out_ref, *, n_context, n_samples, dim):
    # center_ref: [TB, D]            (bf16)
    # pn_ref:     [TB, (C+N)*D]      (bf16, lane-dense)
    # out_ref:    [TB, C+N]          (f32)   cols [0, C) -> positive, [C, C+N) -> negative
    tb = out_ref.shape[0]

    center = center_ref[...].astype(jnp.float32)                       # [TB, D]
    pn = pn_ref[...].astype(jnp.float32).reshape(tb, n_samples, dim)   # [TB, C+N, D]

    # score[b, s] = sum_d center[b, d] * pn[b, s, d]   (VPU mul + reduce)
    scores = jnp.sum(center[:, None, :] * pn, axis=-1)                 # [TB, C+N]

    # Negate the negative-sample columns (== torch .neg() before the bmm).
    col = lax.broadcasted_iota(jnp.int32, (tb, n_samples), 1)
    out_ref[...] = jnp.where(col < n_context, scores, -scores)


def sgns_scores(center_embed, pn_flat, n_context, n_samples, dim, *, tile_b=1024):
    """center_embed: [B, D] bf16, pn_flat: [B, (C+N)*D] bf16 -> [B, C+N] f32."""
    B = center_embed.shape[0]
    tb = min(tile_b, B)
    if tb < B:
        # When actually tiling, keep the sublane (second-minor) tile dim
        # 8-aligned; full-array blocks (tb == B) are exempt from the (8,128) rule.
        tb = max(8, (tb // 8) * 8)

    kernel = functools.partial(
        _sgns_kernel, n_context=n_context, n_samples=n_samples, dim=dim)

    bytes_accessed = (
        B * dim * center_embed.dtype.itemsize            # center read
        + B * n_samples * dim * pn_flat.dtype.itemsize   # pn read (dominant)
        + B * n_samples * 4)                             # f32 scores write
    cost = pl.CostEstimate(
        flops=2 * B * n_samples * dim,
        transcendentals=0,
        bytes_accessed=bytes_accessed)

    return pl.pallas_call(
        kernel,
        out_shape=jax.ShapeDtypeStruct((B, n_samples), jnp.float32),
        grid=(pl.cdiv(B, tb),),
        in_specs=[
            pl.BlockSpec((tb, dim), lambda i: (i, 0)),
            pl.BlockSpec((tb, n_samples * dim), lambda i: (i, 0)),
        ],
        out_specs=pl.BlockSpec((tb, n_samples), lambda i: (i, 0)),
        compiler_params=pltpu.CompilerParams(
            dimension_semantics=("parallel",),          # megacore sharding on v7x
            vmem_limit_bytes=32 * 1024 * 1024,          # ~2.3 MiB/step dbl-buffered + f32 temps
        ),
        cost_estimate=cost,
    )(center_embed, pn_flat)


class SkipGramModelPallas:
    """JAX/Pallas port of the PyTorch SkipGramModel forward pass."""

    def __init__(self, vocab_size, embedding_dim, key):
        k1, k2 = jax.random.split(key)
        # nn.Embedding default init: N(0, 1). Stored bf16 to halve HBM traffic on
        # this memory-bound op; the kernel upcasts to f32 before multiply/sum.
        self.centerword_embeddings = jax.random.normal(
            k1, (vocab_size, embedding_dim), dtype=jnp.float32).astype(jnp.bfloat16)
        self.contextword_embeddings = jax.random.normal(
            k2, (vocab_size, embedding_dim), dtype=jnp.float32).astype(jnp.bfloat16)
        self.vocab_size = vocab_size
        self.embedding_dim = embedding_dim

    def forward(self, center_word, context_words, negative_words):
        B = center_word.shape[0]
        C = context_words.shape[1]
        N = negative_words.shape[1]
        D = self.embedding_dim

        # Embedding lookups (plain-JAX gathers).
        # TODO(synk): fuse these gathers into the kernel (PrefetchScalarGridSpec ids
        # + per-row DMA) to avoid the gather->HBM->kernel round trip; skipped because
        # D=32 rows make 64-byte DMAs (descriptor-overhead dominated) — worth doing
        # once D >= 128 or when the table fits fully in VMEM.
        center_embed = jnp.take(self.centerword_embeddings, center_word, axis=0)   # [B, D]
        pn_words = jnp.concatenate([context_words, negative_words], axis=1)         # [B, C+N]
        pn_embeds = jnp.take(self.contextword_embeddings, pn_words, axis=0)         # [B, C+N, D]
        pn_flat = pn_embeds.reshape(B, (C + N) * D)                                  # lane-dense

        # TODO(synk): the original module's index-out-of-range debug branch (which
        # buggily compares embedding *values* to vocab_size and references undefined
        # names) is not translated.

        scores = sgns_scores(center_embed, pn_flat, C, C + N, D)                     # [B, C+N]
        positive_score = scores[:, :C]
        negative_score = scores[:, C:]
        return positive_score, negative_score


if __name__ == "__main__":
    key = jax.random.PRNGKey(0)
    k_model, k_center, k_context, k_neg = jax.random.split(key, 4)

    vocab_size = 50
    embedding_dim = 32
    batch = 2
    n_context = 8
    n_negative = 8

    model = SkipGramModelPallas(vocab_size, embedding_dim, k_model)

    center_word = jax.random.randint(k_center, (batch,), 0, vocab_size, dtype=jnp.int32)
    context_words = jax.random.randint(k_context, (batch, n_context), 0, vocab_size, dtype=jnp.int32)
    negative_words = jax.random.randint(k_neg, (batch, n_negative), 0, vocab_size, dtype=jnp.int32)

    pos_score, neg_score = model.forward(center_word, context_words, negative_words)
    jax.block_until_ready((pos_score, neg_score))

    # Cross-check against a pure-JAX reference of the PyTorch semantics (same bf16
    # embeddings, f32 math — matches the kernel's upcast-then-reduce).
    ce = jnp.take(model.centerword_embeddings, center_word, axis=0).astype(jnp.float32)
    cx = jnp.take(model.contextword_embeddings, context_words, axis=0).astype(jnp.float32)
    ng = jnp.take(model.contextword_embeddings, negative_words, axis=0).astype(jnp.float32)
    pos_ref = jnp.einsum("bd,bcd->bc", ce, cx)
    neg_ref = jnp.einsum("bd,bnd->bn", ce, -ng)

    assert pos_score.shape == (batch, n_context)
    assert neg_score.shape == (batch, n_negative)
    assert jnp.allclose(pos_score, pos_ref, atol=1e-4, rtol=1e-4)
    assert jnp.allclose(neg_score, neg_ref, atol=1e-4, rtol=1e-4)

    print("KERNEL_OK")
</pallas_src>

<mosaic_0001>
module attributes {stable_mosaic.version = 11 : i64} {
  func.func @_sgns_kernel(%arg0: i32, %arg1: memref<2x32xbf16, #tpu.memory_space<vmem>>, %arg2: memref<2x512xbf16, #tpu.memory_space<vmem>>, %arg3: memref<2x16xf32, #tpu.memory_space<vmem>>) attributes {dimension_semantics = [#tpu.dimension_semantics<parallel>], iteration_bounds = array<i64: 1>, scalar_prefetch = 0 : i64, scratch_operands = 0 : i64, tpu.core_type = #tpu.core_type<tc>, window_params = [{transform_indices = @transform_0, window_bounds = array<i64: 2, 32>}, {transform_indices = @transform_1, window_bounds = array<i64: 2, 512>}, {transform_indices = @transform_2, window_bounds = array<i64: 2, 16>}]} {
    %c0 = arith.constant 0 : index
    %c0_0 = arith.constant 0 : index
    %0 = vector.load %arg1[%c0, %c0_0] : memref<2x32xbf16, #tpu.memory_space<vmem>>, vector<2x32xbf16>
    %1 = arith.extf %0 : vector<2x32xbf16> to vector<2x32xf32>
    %c0_1 = arith.constant 0 : index
    %c0_2 = arith.constant 0 : index
    %2 = vector.load %arg2[%c0_1, %c0_2] : memref<2x512xbf16, #tpu.memory_space<vmem>>, vector<2x512xbf16>
    %3 = arith.extf %2 : vector<2x512xbf16> to vector<2x512xf32>
    %4 = vector.shape_cast %3 : vector<2x512xf32> to vector<2x16x32xf32>
    %5 = vector.shape_cast %1 : vector<2x32xf32> to vector<2x1x32xf32>
    %6 = vector.broadcast %5 : vector<2x1x32xf32> to vector<2x16x32xf32>
    %7 = arith.mulf %6, %4 : vector<2x16x32xf32>
    %cst = arith.constant dense<0.000000e+00> : vector<2x16xf32>
    %8 = vector.multi_reduction <add>, %7, %cst [2] : vector<2x16x32xf32> to vector<2x16xf32>
    %9 = tpu.iota {dimensions = array<i32: 1>} : vector<2x16xi32>
    %c8_i32 = arith.constant 8 : i32
    %10 = vector.broadcast %c8_i32 : i32 to vector<2x16xi32>
    %11 = arith.cmpi slt, %9, %10 : vector<2x16xi32>
    %cst_3 = arith.constant 0.000000e+00 : f32
    %12 = vector.broadcast %cst_3 : f32 to vector<2x16xf32>
    %13 = arith.subf %12, %8 : vector<2x16xf32>
    %14 = arith.select %11, %8, %13 : vector<2x16xi1>, vector<2x16xf32>
    %c0_4 = arith.constant 0 : index
    %c0_5 = arith.constant 0 : index
    %15 = vector.load %arg3[%c0_4, %c0_5] : memref<2x16xf32, #tpu.memory_space<vmem>>, vector<2x16xf32>
    tpu.vector_store %arg3[%c0_4, %c0_5], %14 {strides = array<i32>} : memref<2x16xf32, #tpu.memory_space<vmem>>, vector<2x16xf32>,
    return
  }
  func.func @transform_0(%arg0: i32) -> (i32, i32) {
    %c0_i32 = arith.constant 0 : i32
    %c0_i32_0 = arith.constant 0 : i32
    return %arg0, %c0_i32 : i32, i32
  }
  func.func @transform_1(%arg0: i32) -> (i32, i32) {
    %c0_i32 = arith.constant 0 : i32
    %c0_i32_0 = arith.constant 0 : i32
    return %arg0, %c0_i32 : i32, i32
  }
  func.func @transform_2(%arg0: i32) -> (i32, i32) {
    %c0_i32 = arith.constant 0 : i32
    %c0_i32_0 = arith.constant 0 : i32
    return %arg0, %c0_i32 : i32, i32
  }
}

</mosaic_0001>

<llo_original>
// kernel: tpu_custom_call.1
$region0: #{tpu_custom_call.1}
  #allocation0 [shape = 'u32[]', space=smem, size = 0x4, offset = 0x4, fixed_abs, tag = 'smem constant byte address 0x4 - core index']
  #allocation1 [shape = 'u32[144,128]{1,0:T(1,128)}', space=vmem, size = 0x12000, scoped, tag = 'internal scratch']
  %s0 = inlined_call_operand.hbm [shape: bf16[2,32], index: 0, kind: input, shape index: {}]
  %s1 = inlined_call_operand.hbm [shape: bf16[2,512], index: 1, kind: input, shape index: {}]
  %s2 = inlined_call_operand.hbm [shape: f32[2,16], index: 2, kind: output, shape index: {}]
  %s3 = sld [smem:[#allocation0]]
  $region26: #{tpu_custom_call.1} parent=0
    _
  %s5 = ssub.s32 1, %s3
  %s6 = scalar_select 0, %s5, %s3
  $region1: #{tpu_custom_call.1} parent=0
    #allocation2 [shape = 'u8[512]{0}', space=vmem, size = 0x400, scoped, tag = 'input window, operand 0, single buffered']
    #allocation3 [shape = 's32[1]{0}', space=sflag, size = 0x4, scoped, tag = 'scoped memory for tpu_custom_call.1']
    #allocation4 [shape = 's32[1]{0}', space=sflag, size = 0x4, scoped, tag = 'scoped memory for tpu_custom_call.1']
    #allocation5 [shape = 'u8[2048]{0}', space=vmem, size = 0x800, scoped, tag = 'input window, operand 1, single buffered']
    #allocation6 [shape = 's32[1]{0}', space=sflag, size = 0x4, scoped, tag = 'scoped memory for tpu_custom_call.1']
    #allocation7 [shape = 'u8[1024]{0}', space=vmem, size = 0x400, scoped, tag = 'output window, operand 0, single buffered']
    %7 = vsyncpa [#allocation3], 0
    %8 = vsyncpa [#allocation6], 0
    %9 = vsyncpa [#allocation4], 0
    // Predicated region
    $region2: #{tpu_custom_call.1} parent=1 // pred_check
      _
    $region3: #{tpu_custom_call.1} parent=1 // pred_check_branch
      %11 = sbr.rel (0) target = $region5
    $region4: #{tpu_custom_call.1} parent=1 // pred_region
      %s13 = ssub.s32 16, 16
      %14 = vsyncadd [#allocation3], %s13
      %s16 = sshll.u32 [#allocation2], 4
      %s17 = int_to_ptr.vmem [resolvable:$true] %s16
      %19 = dma.hbm_to_vmem [thread:$0]  %s0, 16, %s17, [#allocation3]
    $region5: #{tpu_custom_call.1} parent=1 // pred_fallthru
      _
    // Predicated region
    $region6: #{tpu_custom_call.1} parent=1 // pred_check
      _
    $region7: #{tpu_custom_call.1} parent=1 // pred_check_branch
      %21 = sbr.rel (0) target = $region9
    $region8: #{tpu_custom_call.1} parent=1 // pred_region
      %s23 = ssub.s32 64, 64
      %24 = vsyncadd [#allocation6], %s23
      %s26 = sshll.u32 [#allocation5], 4
      %s27 = int_to_ptr.vmem [resolvable:$true] %s26
      %29 = dma.hbm_to_vmem [thread:$0]  %s1, 64, %s27, [#allocation6]
    $region9: #{tpu_custom_call.1} parent=1 // pred_fallthru
      _
    // Predicated region
    $region10: #{tpu_custom_call.1} parent=1 // pred_check
      _
    $region11: #{tpu_custom_call.1} parent=1 // pred_check_branch
      %31 = sbr.rel (0) target = $region13
    $region12: #{tpu_custom_call.1} parent=1 // pred_region
      %32 = dma.done [#allocation3], 16
    $region13: #{tpu_custom_call.1} parent=1 // pred_fallthru
      _
    // Predicated region
    $region14: #{tpu_custom_call.1} parent=1 // pred_check
      _
    $region15: #{tpu_custom_call.1} parent=1 // pred_check_branch
      %34 = sbr.rel (0) target = $region17
    $region16: #{tpu_custom_call.1} parent=1 // pred_region
      %35 = dma.done [#allocation6], 64
    $region17: #{tpu_custom_call.1} parent=1 // pred_fallthru
      _
    %v36 = vld [vmem:[#allocation2] sm:$0x1]
    %v37 = vunpack.c.l.bf16 %v36
    %v38 = vld [vmem:[#allocation5] sm:$0xf]
    %v39 = vunpack.c.l.bf16 %v38
    %v41 = vrot.slane %v39, 2
    %43 = vrot.lane.b32.xlu0 %v39, 96
    %v44 = vpop.permute.xlu0 %43
    %v45 = vrot.slane %v44, 2
    %47 = vrot.lane.b32.xlu0 %v39, 64
    %v48 = vpop.permute.xlu0 %47
    %v49 = vrot.slane %v48, 2
    %51 = vrot.lane.b32.xlu0 %v39, 32
    %v52 = vpop.permute.xlu0 %51
    %v53 = vrot.slane %v52, 2
    %v55 = vrot.slane %v39, 4
    %v57 = vrot.slane %v44, 4
    %v59 = vrot.slane %v48, 4
    %v61 = vrot.slane %v52, 4
    %v63 = vrot.slane %v39, 6
    %v65 = vrot.slane %v44, 6
    %v67 = vrot.slane %v48, 6
    %v69 = vrot.slane %v52, 6
    %v74 = vcombine.low %v39, %v44
    %v76 = vunpack.c.l.s4 1934713408
    %v77 = vunpack.c.0.s8 %v76
    %v78 = vlaneseq
    %v79 = vshrl.u32 %v78, 7
    %v80 = vsub.s32 %v77, %v79
    %v81 = vrot.slane %v74, %v80
    %v82 = vcombine.high %v81, 0.0
    %v83 = vcombine.low %v48, %v52
    %v85 = vunpack.c.l.s4 1934713408
    %v86 = vunpack.c.0.s8 %v85
    %v87 = vlaneseq
    %v88 = vshrl.u32 %v87, 7
    %v89 = vsub.s32 %v86, %v88
    %v90 = vrot.slane %v83, %v89
    %v91 = vcombine.high %v90, 0.0
    %v92 = vcombine.low %v41, %v45
    %v94 = vunpack.c.l.s4 1934713408
    %v95 = vunpack.c.0.s8 %v94
    %v96 = vlaneseq
    %v97 = vshrl.u32 %v96, 7
    %v98 = vsub.s32 %v95, %v97
    %v99 = vrot.slane %v92, %v98
    %v100 = vcombine.high %v99, 0.0
    %v101 = vcombine.low %v49, %v53
    %v103 = vunpack.c.l.s4 1934713408
    %v104 = vunpack.c.0.s8 %v103
    %v105 = vlaneseq
    %v106 = vshrl.u32 %v105, 7
    %v107 = vsub.s32 %v104, %v106
    %v108 = vrot.slane %v101, %v107
    %v109 = vcombine.high %v108, 0.0
    %v110 = vcombine.low %v55, %v57
    %v112 = vunpack.c.l.s4 1934713408
    %v113 = vunpack.c.0.s8 %v112
    %v114 = vlaneseq
    %v115 = vshrl.u32 %v114, 7
    %v116 = vsub.s32 %v113, %v115
    %v117 = vrot.slane %v110, %v116
    %v118 = vcombine.high %v117, 0.0
    %v119 = vcombine.low %v59, %v61
    %v121 = vunpack.c.l.s4 1934713408
    %v122 = vunpack.c.0.s8 %v121
    %v123 = vlaneseq
    %v124 = vshrl.u32 %v123, 7
    %v125 = vsub.s32 %v122, %v124
    %v126 = vrot.slane %v119, %v125
    %v127 = vcombine.high %v126, 0.0
    %v128 = vcombine.low %v63, %v65
    %v130 = vunpack.c.l.s4 1934713408
    %v131 = vunpack.c.0.s8 %v130
    %v132 = vlaneseq
    %v133 = vshrl.u32 %v132, 7
    %v134 = vsub.s32 %v131, %v133
    %v135 = vrot.slane %v128, %v134
    %v136 = vcombine.high %v135, 0.0
    %v137 = vcombine.low %v67, %v69
    %v139 = vunpack.c.l.s4 1934713408
    %v140 = vunpack.c.0.s8 %v139
    %v141 = vlaneseq
    %v142 = vshrl.u32 %v141, 7
    %v143 = vsub.s32 %v140, %v142
    %v144 = vrot.slane %v137, %v143
    %v145 = vcombine.high %v144, 0.0
    %v148 = vunpack.c.l.s4 1966171168
    %v149 = vunpack.c.0.s8 %v148
    %v150 = vlaneseq
    %v151 = vshrl.u32 %v150, 7
    %v152 = vsub.s32 %v149, %v151
    %v153 = vrot.slane %v37, %v152
    %v154 = vcombine.high %v153, %v153
    %v155 = vlaneseq
    %v156 = vshrl.u32 %v155, 7
    %v157 = vsub.s32 0, %v156
    %v158 = vrot.slane %v153, %v157
    %v159 = vlaneseq
    %v160 = vshrl.u32 %v159, 7
    %v161 = vsub.s32 0, %v160
    %v162 = vrot.slane %v154, %v161
    %v181 = vcombine.low %v81, %v90
    %v182 = vcombine.low %v99, %v108
    %v184 = vunpack.c.l.s4 1983009808
    %v185 = vunpack.c.0.s8 %v184
    %v186 = vlaneseq
    %v187 = vshrl.u32 %v186, 7
    %v188 = vsub.s32 %v185, %v187
    %v189 = vrot.slane %v181, %v188
    %v191 = vunpack.c.l.s4 1983009808
    %v192 = vunpack.c.0.s8 %v191
    %v193 = vlaneseq
    %v194 = vshrl.u32 %v193, 7
    %v195 = vsub.s32 %v192, %v194
    %v196 = vrot.slane %v182, %v195
    %v197 = vcombine.low %v189, %v196
    %v198 = vcombine.low %v117, %v126
    %v199 = vcombine.low %v135, %v144
    %v201 = vunpack.c.l.s4 1983009808
    %v202 = vunpack.c.0.s8 %v201
    %v203 = vlaneseq
    %v204 = vshrl.u32 %v203, 7
    %v205 = vsub.s32 %v202, %v204
    %v206 = vrot.slane %v198, %v205
    %v208 = vunpack.c.l.s4 1983009808
    %v209 = vunpack.c.0.s8 %v208
    %v210 = vlaneseq
    %v211 = vshrl.u32 %v210, 7
    %v212 = vsub.s32 %v209, %v211
    %v213 = vrot.slane %v199, %v212
    %v214 = vcombine.low %v206, %v213
    %v215 = vcombine.low %v82, %v91
    %v216 = vcombine.low %v100, %v109
    %v218 = vunpack.c.l.s4 1983009808
    %v219 = vunpack.c.0.s8 %v218
    %v220 = vlaneseq
    %v221 = vshrl.u32 %v220, 7
    %v222 = vsub.s32 %v219, %v221
    %v223 = vrot.slane %v215, %v222
    %v225 = vunpack.c.l.s4 1983009808
    %v226 = vunpack.c.0.s8 %v225
    %v227 = vlaneseq
    %v228 = vshrl.u32 %v227, 7
    %v229 = vsub.s32 %v226, %v228
    %v230 = vrot.slane %v216, %v229
    %v231 = vcombine.low %v223, %v230
    %v232 = vcombine.low %v118, %v127
    %v233 = vcombine.low %v136, %v145
    %v235 = vunpack.c.l.s4 1983009808
    %v236 = vunpack.c.0.s8 %v235
    %v237 = vlaneseq
    %v238 = vshrl.u32 %v237, 7
    %v239 = vsub.s32 %v236, %v238
    %v240 = vrot.slane %v232, %v239
    %v242 = vunpack.c.l.s4 1983009808
    %v243 = vunpack.c.0.s8 %v242
    %v244 = vlaneseq
    %v245 = vshrl.u32 %v244, 7
    %v246 = vsub.s32 %v243, %v245
    %v247 = vrot.slane %v233, %v246
    %v248 = vcombine.low %v240, %v247
    %v253 = vmul.f32 %v158, %v197
    %v254 = vmul.f32 %v158, %v214
    %v255 = vmul.f32 %v162, %v231
    %v256 = vmul.f32 %v162, %v248
    %vm257 = vcmask 261120
    %v258 = vsel %vm257, %v253, 0.0
    %259 = vadd.xlane.f32.xlu0 %v258
    %v260 = vpop.xlane.xlu0 %259
    %v261 = vsel %vm257, %v254, 0.0
    %262 = vadd.xlane.f32.xlu0 %v261
    %v263 = vpop.xlane.xlu0 %262
    %v264 = vsel %vm257, %v255, 0.0
    %265 = vadd.xlane.f32.xlu0 %v264
    %v266 = vpop.xlane.xlu0 %265
    %v267 = vsel %vm257, %v256, 0.0
    %268 = vadd.xlane.f32.xlu0 %v267
    %v269 = vpop.xlane.xlu0 %268
    %v270 = vlaneseq
    %v271 = vand.u32 %v270, 127
    %vm272 = vcmp.lt.s32.totalorder %v271, 8
    %v273 = vsub.f32 0.0, %v260
    %v274 = vsub.f32 0.0, %v263
    %v275 = vsub.f32 0.0, %v266
    %v276 = vsub.f32 0.0, %v269
    %v281 = vlaneseq
    %v282 = vshrl.u32 %v281, 7
    %v283 = vsub.s32 %v271, %v282
    %v284 = vrot.slane %v260, %v283
    %v285 = vadd.s32 %v271, 4294967288
    %v286 = vlaneseq
    %v287 = vshrl.u32 %v286, 7
    %v288 = vsub.s32 %v285, %v287
    %v289 = vrot.slane %v263, %v288
    %vm290 = vcmask 130112
    %v291 = vsel %vm290, %v289, %v284
    %v292 = vlaneseq
    %v293 = vshrl.u32 %v292, 7
    %v294 = vsub.s32 %v271, %v293
    %v295 = vrot.slane %v266, %v294
    %v296 = vlaneseq
    %v297 = vshrl.u32 %v296, 7
    %v298 = vsub.s32 %v285, %v297
    %v299 = vrot.slane %v269, %v298
    %v300 = vsel %vm290, %v299, %v295
    %vm301 = vcmask 1041409
    %v302 = vsel %vm301, %v300, %v291
    %v308 = vlaneseq
    %v309 = vshrl.u32 %v308, 7
    %v310 = vsub.s32 %v271, %v309
    %v311 = vrot.slane %v273, %v310
    %v312 = vlaneseq
    %v313 = vshrl.u32 %v312, 7
    %v314 = vsub.s32 %v285, %v313
    %v315 = vrot.slane %v274, %v314
    %v316 = vsel %vm290, %v315, %v311
    %v317 = vlaneseq
    %v318 = vshrl.u32 %v317, 7
    %v319 = vsub.s32 %v271, %v318
    %v320 = vrot.slane %v275, %v319
    %v321 = vlaneseq
    %v322 = vshrl.u32 %v321, 7
    %v323 = vsub.s32 %v285, %v322
    %v324 = vrot.slane %v276, %v323
    %v325 = vsel %vm290, %v324, %v320
    %v326 = vsel %vm301, %v325, %v316
    %v328 = vsel %vm272, %v302, %v326
    %vm329 = vcmask 123904
    %330 = vst.msk [vmem:[#allocation7] sm:$0x3] %vm329, %v328
    // Predicated region
    $region18: #{tpu_custom_call.1} parent=1 // pred_check
      _
    $region19: #{tpu_custom_call.1} parent=1 // pred_check_branch
      %332 = sbr.rel (0) target = $region21
    $region20: #{tpu_custom_call.1} parent=1 // pred_region
      %s334 = ssub.s32 32, 32
      %335 = vsyncadd [#allocation4], %s334
      %s337 = sshll.u32 [#allocation7], 4
      %s338 = int_to_ptr.vmem [resolvable:$true] %s337
      %340 = dma.vmem_to_hbm [thread:$0]  %s338, 32, %s2, [#allocation4]
    $region21: #{tpu_custom_call.1} parent=1 // pred_fallthru
      _
    // Predicated region
    $region22: #{tpu_custom_call.1} parent=1 // pred_check
      _
    $region23: #{tpu_custom_call.1} parent=1 // pred_check_branch
      %342 = sbr.rel (0) target = $region25
    $region24: #{tpu_custom_call.1} parent=1 // pred_region
      %343 = dma.done [#allocation4], 32
    $region25: #{tpu_custom_call.1} parent=1 // pred_fallthru
      _
    %344 = vsyncpa [#allocation3], 1
    %345 = vsyncpa [#allocation6], 1
    %346 = vsyncpa [#allocation4], 1

</llo_original>
